<compile_context>
chip_gen: v7x
topology: tpu7x:2x2x1
jax: 0.10.0
libtpu: 0.0.40
codegen_flags: <defaults>
</compile_context>

<pallas_src>
import jax
import jax.numpy as jnp
from jax.experimental import pallas as pl
from jax.experimental.pallas import tpu as pltpu

IMG_DIM = 28 * 28
EMB_DIM = 16
HID_DIM = 128
NUM_CLASSES = 10
LATENT_DIM = 3
HEAD_DIM = 2 * LATENT_DIM      # mu | logvar merged
HEAD_PAD = 8                   # pad merged head width for tidy layout; cols 6..7 are zero
TILE_B_MAX = 1024              # rows per grid step; fits v5e / v6e / v7x VMEM budgets


def _round_up(x, m):
    return ((x + m - 1) // m) * m


def encoder_kernel(img_ref, contrib_ref, wh_img_ref, w_head_ref, b_head_ref, out_ref):
    # hidden = relu(img @ W_h[:784] + contrib)   where contrib already contains
    #          relu(W_emb[label] + b_emb) @ W_h[784:] + b_h  (precomputed lookup)
    hid = jnp.dot(img_ref[...], wh_img_ref[...], preferred_element_type=jnp.float32)
    hid = jnp.maximum(hid + contrib_ref[...], 0.0)

    # merged heads: out[:, 0:3] = mu, out[:, 3:6] = logvar, out[:, 6:8] = 0 (padding)
    out_ref[...] = (jnp.dot(hid, w_head_ref[...], preferred_element_type=jnp.float32)
                    + b_head_ref[...])


def init_params(key):
    """Deterministic init mimicking nn.Linear defaults (uniform +-1/sqrt(fan_in))."""
    ks = jax.random.split(key, 8)

    def unif(k, shape, fan_in):
        bound = 1.0 / jnp.sqrt(fan_in)
        return jax.random.uniform(k, shape, jnp.float32, -bound, bound)

    w_h = unif(ks[2], (IMG_DIM + EMB_DIM, HID_DIM), IMG_DIM + EMB_DIM)
    return {
        "w_emb": unif(ks[0], (NUM_CLASSES, EMB_DIM), NUM_CLASSES),
        "b_emb": unif(ks[1], (1, EMB_DIM), NUM_CLASSES),
        "wh_img": w_h[:IMG_DIM, :],
        "wh_emb": w_h[IMG_DIM:, :],
        "b_h": unif(ks[3], (1, HID_DIM), IMG_DIM + EMB_DIM),
        "w_mu": unif(ks[4], (HID_DIM, LATENT_DIM), HID_DIM),
        "b_mu": unif(ks[5], (1, LATENT_DIM), HID_DIM),
        "w_lv": unif(ks[6], (HID_DIM, LATENT_DIM), HID_DIM),
        "b_lv": unif(ks[7], (1, LATENT_DIM), HID_DIM),
    }


def fold_params(params):
    """Constant-fold the label branch and merge the mu/logvar heads (done once)."""
    # one_hot(l) @ W_emb == W_emb[l], so the whole embedding branch is a row lookup.
    emb_rows = jnp.maximum(params["w_emb"] + params["b_emb"], 0.0)          # (10, 16)
    contrib_table = emb_rows @ params["wh_emb"] + params["b_h"]             # (10, 128)

    w_head = jnp.zeros((HID_DIM, HEAD_PAD), jnp.float32)
    w_head = w_head.at[:, :LATENT_DIM].set(params["w_mu"])
    w_head = w_head.at[:, LATENT_DIM:HEAD_DIM].set(params["w_lv"])
    b_head = jnp.zeros((1, HEAD_PAD), jnp.float32)
    b_head = b_head.at[:, :LATENT_DIM].set(params["b_mu"])
    b_head = b_head.at[:, LATENT_DIM:HEAD_DIM].set(params["b_lv"])

    return {
        "contrib_table": contrib_table,
        "wh_img": params["wh_img"],
        "w_head": w_head,
        "b_head": b_head,
    }


def encoder_forward(image, label, folded):
    B = image.shape[0]
    img = image.reshape(B, -1).astype(jnp.float32)                          # (B, 784)
    contrib = jnp.take(folded["contrib_table"], label, axis=0)              # (B, 128)

    # Batch tiling: multiple of 8 (sublane), capped at TILE_B_MAX; pad B to a full tile.
    tile_b = min(TILE_B_MAX, _round_up(B, 8))
    b_pad = _round_up(B, tile_b)
    if b_pad != B:
        img = jnp.pad(img, ((0, b_pad - B), (0, 0)))
        contrib = jnp.pad(contrib, ((0, b_pad - B), (0, 0)))

    cost = pl.CostEstimate(
        flops=2 * b_pad * IMG_DIM * HID_DIM + 2 * b_pad * HID_DIM * HEAD_PAD,
        transcendentals=0,
        bytes_accessed=4 * (b_pad * IMG_DIM + b_pad * HID_DIM
                            + IMG_DIM * HID_DIM + HID_DIM * HEAD_PAD + HEAD_PAD
                            + b_pad * HEAD_PAD),
    )

    out = pl.pallas_call(
        encoder_kernel,
        out_shape=jax.ShapeDtypeStruct((b_pad, HEAD_PAD), jnp.float32),
        grid_spec=pltpu.PrefetchScalarGridSpec(
            num_scalar_prefetch=0,
            grid=(b_pad // tile_b,),
            in_specs=[
                pl.BlockSpec((tile_b, IMG_DIM), lambda i: (i, 0)),    # image tile (streamed)
                pl.BlockSpec((tile_b, HID_DIM), lambda i: (i, 0)),    # label contribution tile
                pl.BlockSpec((IMG_DIM, HID_DIM), lambda i: (0, 0)),   # resident weight
                pl.BlockSpec((HID_DIM, HEAD_PAD), lambda i: (0, 0)),  # resident merged head W
                pl.BlockSpec((1, HEAD_PAD), lambda i: (0, 0)),        # resident merged head b
            ],
            out_specs=pl.BlockSpec((tile_b, HEAD_PAD), lambda i: (i, 0)),
        ),
        compiler_params=pltpu.CompilerParams(
            dimension_semantics=("parallel",)),
        cost_estimate=cost,
    )(img, contrib, folded["wh_img"], folded["w_head"], folded["b_head"])

    mu = out[:B, :LATENT_DIM]
    logvar = out[:B, LATENT_DIM:HEAD_DIM]
    return mu, logvar


def encoder_forward_ref(image, label, params):
    """Pure-JAX reference matching the PyTorch module exactly."""
    B = image.shape[0]
    img = image.reshape(B, -1).astype(jnp.float32)
    oh = jax.nn.one_hot(label, NUM_CLASSES, dtype=jnp.float32)
    emb = jnp.maximum(oh @ params["w_emb"] + params["b_emb"], 0.0)
    hid = jnp.maximum(img @ params["wh_img"] + emb @ params["wh_emb"]
                      + params["b_h"], 0.0)
    mu = hid @ params["w_mu"] + params["b_mu"]
    lv = hid @ params["w_lv"] + params["b_lv"]
    return mu, lv


if __name__ == "__main__":
    key = jax.random.PRNGKey(0)
    k_img, k_lbl, k_par = jax.random.split(key, 3)

    B = 8
    image = jax.random.normal(k_img, (B, 1, 28, 28), dtype=jnp.float32)
    label = jax.random.randint(k_lbl, (B,), 0, NUM_CLASSES, dtype=jnp.int32)

    params = init_params(k_par)
    folded = fold_params(params)

    mu, logvar = encoder_forward(image, label, folded)
    jax.block_until_ready((mu, logvar))

    mu_ref, lv_ref = encoder_forward_ref(image, label, params)
    assert jnp.allclose(mu, mu_ref, atol=1e-4, rtol=1e-4)
    assert jnp.allclose(logvar, lv_ref, atol=1e-4, rtol=1e-4)

    print("KERNEL_OK")
</pallas_src>

<mosaic_0001>
module attributes {stable_mosaic.version = 11 : i64} {
  func.func @encoder_kernel(%arg0: i32, %arg1: memref<8x784xf32, #tpu.memory_space<vmem>>, %arg2: memref<8x128xf32, #tpu.memory_space<vmem>>, %arg3: memref<784x128xf32, #tpu.memory_space<vmem>>, %arg4: memref<128x8xf32, #tpu.memory_space<vmem>>, %arg5: memref<1x8xf32, #tpu.memory_space<vmem>>, %arg6: memref<8x8xf32, #tpu.memory_space<vmem>>) attributes {dimension_semantics = [#tpu.dimension_semantics<parallel>], iteration_bounds = array<i64: 1>, scalar_prefetch = 0 : i64, scratch_operands = 0 : i64, tpu.core_type = #tpu.core_type<tc>, window_params = [{transform_indices = @transform_0, window_bounds = array<i64: 8, 784>}, {transform_indices = @transform_1, window_bounds = array<i64: 8, 128>}, {pipeline_mode = #tpu.pipeline_mode<synchronous>, transform_indices = @transform_2, window_bounds = array<i64: 784, 128>}, {pipeline_mode = #tpu.pipeline_mode<synchronous>, transform_indices = @transform_3, window_bounds = array<i64: 128, 8>}, {pipeline_mode = #tpu.pipeline_mode<synchronous>, transform_indices = @transform_4, window_bounds = array<i64: 1, 8>}, {transform_indices = @transform_5, window_bounds = array<i64: 8, 8>}]} {
    %c0 = arith.constant 0 : index
    %c0_0 = arith.constant 0 : index
    %0 = vector.load %arg1[%c0, %c0_0] : memref<8x784xf32, #tpu.memory_space<vmem>>, vector<8x784xf32>
    %c0_1 = arith.constant 0 : index
    %c0_2 = arith.constant 0 : index
    %1 = vector.load %arg3[%c0_1, %c0_2] : memref<784x128xf32, #tpu.memory_space<vmem>>, vector<784x128xf32>
    %cst = arith.constant dense<0.000000e+00> : vector<8x128xf32>
    %2 = tpu.matmul %0, %1, %cst {dimension_numbers = #tpu.dot_dimension_numbers<[1], [0], [0], [1], [0, 0, 1, 1], [], []>} : vector<8x784xf32>, vector<784x128xf32>, vector<8x128xf32> -> vector<8x128xf32>
    %c0_3 = arith.constant 0 : index
    %c0_4 = arith.constant 0 : index
    %3 = vector.load %arg2[%c0_3, %c0_4] : memref<8x128xf32, #tpu.memory_space<vmem>>, vector<8x128xf32>
    %4 = arith.addf %2, %3 : vector<8x128xf32>
    %cst_5 = arith.constant 0.000000e+00 : f32
    %5 = vector.broadcast %cst_5 : f32 to vector<8x128xf32>
    %6 = arith.maximumf %4, %5 : vector<8x128xf32>
    %c0_6 = arith.constant 0 : index
    %c0_7 = arith.constant 0 : index
    %7 = vector.load %arg4[%c0_6, %c0_7] : memref<128x8xf32, #tpu.memory_space<vmem>>, vector<128x8xf32>
    %cst_8 = arith.constant dense<0.000000e+00> : vector<8x8xf32>
    %8 = tpu.matmul %6, %7, %cst_8 {dimension_numbers = #tpu.dot_dimension_numbers<[1], [0], [0], [1], [0, 0, 1, 1], [], []>} : vector<8x128xf32>, vector<128x8xf32>, vector<8x8xf32> -> vector<8x8xf32>
    %c0_9 = arith.constant 0 : index
    %c0_10 = arith.constant 0 : index
    %9 = vector.load %arg5[%c0_9, %c0_10] : memref<1x8xf32, #tpu.memory_space<vmem>>, vector<1x8xf32>
    %10 = vector.broadcast %9 : vector<1x8xf32> to vector<8x8xf32>
    %11 = arith.addf %8, %10 : vector<8x8xf32>
    %c0_11 = arith.constant 0 : index
    %c0_12 = arith.constant 0 : index
    %12 = vector.load %arg6[%c0_11, %c0_12] : memref<8x8xf32, #tpu.memory_space<vmem>>, vector<8x8xf32>
    tpu.vector_store %arg6[%c0_11, %c0_12], %11 {strides = array<i32>} : memref<8x8xf32, #tpu.memory_space<vmem>>, vector<8x8xf32>,
    return
  }
  func.func @transform_0(%arg0: i32) -> (i32, i32) {
    %c0_i32 = arith.constant 0 : i32
    %c0_i32_0 = arith.constant 0 : i32
    return %arg0, %c0_i32 : i32, i32
  }
  func.func @transform_1(%arg0: i32) -> (i32, i32) {
    %c0_i32 = arith.constant 0 : i32
    %c0_i32_0 = arith.constant 0 : i32
    return %arg0, %c0_i32 : i32, i32
  }
  func.func @transform_2(%arg0: i32) -> (i32, i32) {
    %c0_i32 = arith.constant 0 : i32
    %c0_i32_0 = arith.constant 0 : i32
    %c0_i32_1 = arith.constant 0 : i32
    return %c0_i32, %c0_i32_0 : i32, i32
  }
  func.func @transform_3(%arg0: i32) -> (i32, i32) {
    %c0_i32 = arith.constant 0 : i32
    %c0_i32_0 = arith.constant 0 : i32
    %c0_i32_1 = arith.constant 0 : i32
    return %c0_i32, %c0_i32_0 : i32, i32
  }
  func.func @transform_4(%arg0: i32) -> (i32, i32) {
    %c0_i32 = arith.constant 0 : i32
    %c0_i32_0 = arith.constant 0 : i32
    %c0_i32_1 = arith.constant 0 : i32
    return %c0_i32, %c0_i32_0 : i32, i32
  }
  func.func @transform_5(%arg0: i32) -> (i32, i32) {
    %c0_i32 = arith.constant 0 : i32
    %c0_i32_0 = arith.constant 0 : i32
    return %arg0, %c0_i32 : i32, i32
  }
}

</mosaic_0001>

<llo_original>
// kernel: tpu_custom_call.1
$region0: #{tpu_custom_call.1}
  #allocation0 [shape = 'u32[]', space=smem, size = 0x4, offset = 0x4, fixed_abs, tag = 'smem constant byte address 0x4 - core index']
  #allocation1 [shape = 'u32[144,128]{1,0:T(1,128)}', space=vmem, size = 0x12000, scoped, tag = 'internal scratch']
  %s0 = inlined_call_operand.vmem [shape: f32[8,784], index: 0, kind: input, shape index: {}]
  %s1 = inlined_call_operand.vmem [shape: f32[8,128], index: 1, kind: input, shape index: {}]
  %s2 = inlined_call_operand.hbm [shape: f32[784,128], index: 2, kind: input, shape index: {}]
  %s3 = inlined_call_operand.vmem [shape: f32[128,8], index: 3, kind: input, shape index: {}]
  %s4 = inlined_call_operand.vmem [shape: f32[1,8], index: 4, kind: input, shape index: {}]
  %s5 = inlined_call_operand.hbm [shape: f32[8,8], index: 5, kind: output, shape index: {}]
  %s6 = sld [smem:[#allocation0]]
  $region34: #{tpu_custom_call.1} parent=0
    _
  %s8 = ssub.s32 1, %s6
  %s9 = scalar_select 0, %s8, %s6
  $region1: #{tpu_custom_call.1} parent=0
    #allocation2 [shape = 'u8[401408]{0}', space=vmem, size = 0x62000, scoped, tag = 'input window, operand 2, single buffered']
    #allocation3 [shape = 's32[1]{0}', space=sflag, size = 0x4, scoped, tag = 'scoped memory for tpu_custom_call.1']
    #allocation4 [shape = 's32[1]{0}', space=sflag, size = 0x4, scoped, tag = 'scoped memory for tpu_custom_call.1']
    #allocation5 [shape = 'u8[4096]{0}', space=vmem, size = 0x1000, scoped, tag = 'output window, operand 0, single buffered']
    %10 = vsyncpa [#allocation3], 0
    %11 = vsyncpa [#allocation4], 0
    // Predicated region
    $region2: #{tpu_custom_call.1} parent=1 // pred_check
      _
    $region3: #{tpu_custom_call.1} parent=1 // pred_check_branch
      %13 = sbr.rel (0) target = $region5
    $region4: #{tpu_custom_call.1} parent=1 // pred_region
      _
    $region5: #{tpu_custom_call.1} parent=1 // pred_fallthru
      _
    // Predicated region
    $region6: #{tpu_custom_call.1} parent=1 // pred_check
      _
    $region7: #{tpu_custom_call.1} parent=1 // pred_check_branch
      %15 = sbr.rel (0) target = $region9
    $region8: #{tpu_custom_call.1} parent=1 // pred_region
      _
    $region9: #{tpu_custom_call.1} parent=1 // pred_fallthru
      _
    // Predicated region
    $region10: #{tpu_custom_call.1} parent=1 // pred_check
      _
    $region11: #{tpu_custom_call.1} parent=1 // pred_check_branch
      %17 = sbr.rel (0) target = $region13
    $region12: #{tpu_custom_call.1} parent=1 // pred_region
      %s19 = ssub.s32 12544, 12544
      %20 = vsyncadd [#allocation3], %s19
      %s21 = sshll.u32 [#allocation2], 4
      %s22 = int_to_ptr.vmem [resolvable:$true] %s21
      %27 = dma.hbm_to_vmem [thread:$0]  %s2, 12544, %s22, [#allocation3], 128, 128, 8
    $region13: #{tpu_custom_call.1} parent=1 // pred_fallthru
      _
    // Predicated region
    $region14: #{tpu_custom_call.1} parent=1 // pred_check
      _
    $region15: #{tpu_custom_call.1} parent=1 // pred_check_branch
      %29 = sbr.rel (0) target = $region17
    $region16: #{tpu_custom_call.1} parent=1 // pred_region
      _
    $region17: #{tpu_custom_call.1} parent=1 // pred_fallthru
      _
    // Predicated region
    $region18: #{tpu_custom_call.1} parent=1 // pred_check
      _
    $region19: #{tpu_custom_call.1} parent=1 // pred_check_branch
      %31 = sbr.rel (0) target = $region21
    $region20: #{tpu_custom_call.1} parent=1 // pred_region
      _
    $region21: #{tpu_custom_call.1} parent=1 // pred_fallthru
      _
    // Predicated region
    $region22: #{tpu_custom_call.1} parent=1 // pred_check
      _
    $region23: #{tpu_custom_call.1} parent=1 // pred_check_branch
      %33 = sbr.rel (0) target = $region25
    $region24: #{tpu_custom_call.1} parent=1 // pred_region
      %34 = dma.done [#allocation3], 12544
    $region25: #{tpu_custom_call.1} parent=1 // pred_fallthru
      _
    %v35 = vld [vmem:[%s0] sm:$0xff]
    %v36 = vld [vmem:[%s0 + $0x8] sm:$0xff]
    %v37 = vld [vmem:[%s0 + $0x10] sm:$0xff]
    %v38 = vld [vmem:[%s0 + $0x18] sm:$0xff]
    %v39 = vld [vmem:[%s0 + $0x20] sm:$0xff]
    %v40 = vld [vmem:[%s0 + $0x28] sm:$0xff]
    %v41 = vld [vmem:[%s0 + $0x30] sm:$0xff]
    %v42 = vld [vmem:[#allocation2] sm:$0xff]
    %v43 = vld [vmem:[#allocation2 + $0x8] sm:$0xff]
    %v44 = vld [vmem:[#allocation2 + $0x10] sm:$0xff]
    %v45 = vld [vmem:[#allocation2 + $0x18] sm:$0xff]
    %v46 = vld [vmem:[#allocation2 + $0x20] sm:$0xff]
    %v47 = vld [vmem:[#allocation2 + $0x28] sm:$0xff]
    %v48 = vld [vmem:[#allocation2 + $0x30] sm:$0xff]
    %v49 = vld [vmem:[#allocation2 + $0x38] sm:$0xff]
    %v50 = vld [vmem:[#allocation2 + $0x40] sm:$0xff]
    %v51 = vld [vmem:[#allocation2 + $0x48] sm:$0xff]
    %v52 = vld [vmem:[#allocation2 + $0x50] sm:$0xff]
    %v53 = vld [vmem:[#allocation2 + $0x58] sm:$0xff]
    %v54 = vld [vmem:[#allocation2 + $0x60] sm:$0xff]
    %v55 = vld [vmem:[#allocation2 + $0x68] sm:$0xff]
    %v56 = vld [vmem:[#allocation2 + $0x70] sm:$0xff]
    %v57 = vld [vmem:[#allocation2 + $0x78] sm:$0xff]
    %v58 = vld [vmem:[#allocation2 + $0x80] sm:$0xff]
    %v59 = vld [vmem:[#allocation2 + $0x88] sm:$0xff]
    %v60 = vld [vmem:[#allocation2 + $0x90] sm:$0xff]
    %v61 = vld [vmem:[#allocation2 + $0x98] sm:$0xff]
    %v62 = vld [vmem:[#allocation2 + $0xa0] sm:$0xff]
    %v63 = vld [vmem:[#allocation2 + $0xa8] sm:$0xff]
    %v64 = vld [vmem:[#allocation2 + $0xb0] sm:$0xff]
    %v65 = vld [vmem:[#allocation2 + $0xb8] sm:$0xff]
    %v66 = vld [vmem:[#allocation2 + $0xc0] sm:$0xff]
    %v67 = vld [vmem:[#allocation2 + $0xc8] sm:$0xff]
    %v68 = vld [vmem:[#allocation2 + $0xd0] sm:$0xff]
    %v69 = vld [vmem:[#allocation2 + $0xd8] sm:$0xff]
    %v70 = vld [vmem:[#allocation2 + $0xe0] sm:$0xff]
    %v71 = vld [vmem:[#allocation2 + $0xe8] sm:$0xff]
    %v72 = vld [vmem:[#allocation2 + $0xf0] sm:$0xff]
    %v73 = vld [vmem:[#allocation2 + $0xf8] sm:$0xff]
    %v74 = vld [vmem:[#allocation2 + $0x100] sm:$0xff]
    %v75 = vld [vmem:[#allocation2 + $0x108] sm:$0xff]
    %v76 = vld [vmem:[#allocation2 + $0x110] sm:$0xff]
    %v77 = vld [vmem:[#allocation2 + $0x118] sm:$0xff]
    %v78 = vld [vmem:[#allocation2 + $0x120] sm:$0xff]
    %v79 = vld [vmem:[#allocation2 + $0x128] sm:$0xff]
    %v80 = vld [vmem:[#allocation2 + $0x130] sm:$0xff]
    %v81 = vld [vmem:[#allocation2 + $0x138] sm:$0xff]
    %v82 = vld [vmem:[#allocation2 + $0x140] sm:$0xff]
    %v83 = vld [vmem:[#allocation2 + $0x148] sm:$0xff]
    %v84 = vld [vmem:[#allocation2 + $0x150] sm:$0xff]
    %v85 = vld [vmem:[#allocation2 + $0x158] sm:$0xff]
    %v86 = vld [vmem:[#allocation2 + $0x160] sm:$0xff]
    %v87 = vld [vmem:[#allocation2 + $0x168] sm:$0xff]
    %v88 = vld [vmem:[#allocation2 + $0x170] sm:$0xff]
    %v89 = vld [vmem:[#allocation2 + $0x178] sm:$0xff]
    %v90 = vld [vmem:[#allocation2 + $0x180] sm:$0xff]
    %v91 = vld [vmem:[#allocation2 + $0x188] sm:$0xff]
    %v92 = vld [vmem:[#allocation2 + $0x190] sm:$0xff]
    %v93 = vld [vmem:[#allocation2 + $0x198] sm:$0xff]
    %v94 = vld [vmem:[#allocation2 + $0x1a0] sm:$0xff]
    %v95 = vld [vmem:[#allocation2 + $0x1a8] sm:$0xff]
    %v96 = vld [vmem:[#allocation2 + $0x1b0] sm:$0xff]
    %v97 = vld [vmem:[#allocation2 + $0x1b8] sm:$0xff]
    %v98 = vld [vmem:[#allocation2 + $0x1c0] sm:$0xff]
    %v99 = vld [vmem:[#allocation2 + $0x1c8] sm:$0xff]
    %v100 = vld [vmem:[#allocation2 + $0x1d0] sm:$0xff]
    %v101 = vld [vmem:[#allocation2 + $0x1d8] sm:$0xff]
    %v102 = vld [vmem:[#allocation2 + $0x1e0] sm:$0xff]
    %v103 = vld [vmem:[#allocation2 + $0x1e8] sm:$0xff]
    %v104 = vld [vmem:[#allocation2 + $0x1f0] sm:$0xff]
    %v105 = vld [vmem:[#allocation2 + $0x1f8] sm:$0xff]
    %v106 = vld [vmem:[#allocation2 + $0x200] sm:$0xff]
    %v107 = vld [vmem:[#allocation2 + $0x208] sm:$0xff]
    %v108 = vld [vmem:[#allocation2 + $0x210] sm:$0xff]
    %v109 = vld [vmem:[#allocation2 + $0x218] sm:$0xff]
    %v110 = vld [vmem:[#allocation2 + $0x220] sm:$0xff]
    %v111 = vld [vmem:[#allocation2 + $0x228] sm:$0xff]
    %v112 = vld [vmem:[#allocation2 + $0x230] sm:$0xff]
    %v113 = vld [vmem:[#allocation2 + $0x238] sm:$0xff]
    %v114 = vld [vmem:[#allocation2 + $0x240] sm:$0xff]
    %v115 = vld [vmem:[#allocation2 + $0x248] sm:$0xff]
    %v116 = vld [vmem:[#allocation2 + $0x250] sm:$0xff]
    %v117 = vld [vmem:[#allocation2 + $0x258] sm:$0xff]
    %v118 = vld [vmem:[#allocation2 + $0x260] sm:$0xff]
    %v119 = vld [vmem:[#allocation2 + $0x268] sm:$0xff]
    %v120 = vld [vmem:[#allocation2 + $0x270] sm:$0xff]
    %v121 = vld [vmem:[#allocation2 + $0x278] sm:$0xff]
    %v122 = vld [vmem:[#allocation2 + $0x280] sm:$0xff]
    %v123 = vld [vmem:[#allocation2 + $0x288] sm:$0xff]
    %v124 = vld [vmem:[#allocation2 + $0x290] sm:$0xff]
    %v125 = vld [vmem:[#allocation2 + $0x298] sm:$0xff]
    %v126 = vld [vmem:[#allocation2 + $0x2a0] sm:$0xff]
    %v127 = vld [vmem:[#allocation2 + $0x2a8] sm:$0xff]
    %v128 = vld [vmem:[#allocation2 + $0x2b0] sm:$0xff]
    %v129 = vld [vmem:[#allocation2 + $0x2b8] sm:$0xff]
    %v130 = vld [vmem:[#allocation2 + $0x2c0] sm:$0xff]
    %v131 = vld [vmem:[#allocation2 + $0x2c8] sm:$0xff]
    %v132 = vld [vmem:[#allocation2 + $0x2d0] sm:$0xff]
    %v133 = vld [vmem:[#allocation2 + $0x2d8] sm:$0xff]
    %v134 = vld [vmem:[#allocation2 + $0x2e0] sm:$0xff]
    %v135 = vld [vmem:[#allocation2 + $0x2e8] sm:$0xff]
    %v136 = vld [vmem:[#allocation2 + $0x2f0] sm:$0xff]
    %v137 = vld [vmem:[#allocation2 + $0x2f8] sm:$0xff]
    %v138 = vld [vmem:[#allocation2 + $0x300] sm:$0xff]
    %v139 = vld [vmem:[#allocation2 + $0x308] sm:$0xff]
    %v140 = vld [vmem:[%s1] sm:$0xff]
    %vm141 = vcmask 130048
    %v143 = vsel %vm141, %v41, 0
    %145 = vmatprep.subr.mxu0 0.0
    %146 = vmatpush1.msra.mxu0 %v42
    %147 = vmatprep.subr.mxu0 0.0
    %148 = vmatpush1.msra.mxu0 %v43
    %149 = vmatprep.subr.mxu0 0.0
    %150 = vmatpush1.msra.mxu0 %v44
    %151 = vmatprep.subr.mxu0 0.0
    %152 = vmatpush1.msra.mxu0 %v45
    %153 = vmatprep.subr.mxu0 0.0
    %154 = vmatpush1.msra.mxu0 %v46
    %155 = vmatprep.subr.mxu0 0.0
    %156 = vmatpush1.msra.mxu0 %v47
    %157 = vmatprep.subr.mxu0 0.0
    %158 = vmatpush1.msra.mxu0 %v48
    %159 = vmatprep.subr.mxu0 0.0
    %160 = vmatpush1.msra.mxu0 %v49
    %161 = vmatprep.subr.mxu0 0.0
    %162 = vmatpush1.msra.mxu0 %v50
    %163 = vmatprep.subr.mxu0 0.0
    %164 = vmatpush1.msra.mxu0 %v51
    %165 = vmatprep.subr.mxu0 0.0
    %166 = vmatpush1.msra.mxu0 %v52
    %167 = vmatprep.subr.mxu0 0.0
    %168 = vmatpush1.msra.mxu0 %v53
    %169 = vmatprep.subr.mxu0 0.0
    %170 = vmatpush1.msra.mxu0 %v54
    %171 = vmatprep.subr.mxu0 0.0
    %172 = vmatpush1.msra.mxu0 %v55
    %173 = vmatprep.subr.mxu0 0.0
    %174 = vmatpush1.msra.mxu0 %v56
    %175 = vmatprep.subr.mxu0 0.0
    %176 = vmatpush1.msra.mxu0 %v57
    %177 = vmatprep.subr.mxu0 0.0
    %178 = vmatpush1.msra.mxu0 %v58
    %179 = vmatprep.subr.mxu0 0.0
    %180 = vmatpush1.msra.mxu0 %v59
    %181 = vmatprep.subr.mxu0 0.0
    %182 = vmatpush1.msra.mxu0 %v60
    %183 = vmatprep.subr.mxu0 0.0
    %184 = vmatpush1.msra.mxu0 %v61
    %185 = vmatprep.subr.mxu0 0.0
    %186 = vmatpush1.msra.mxu0 %v62
    %187 = vmatprep.subr.mxu0 0.0
    %188 = vmatpush1.msra.mxu0 %v63
    %189 = vmatprep.subr.mxu0 0.0
    %190 = vmatpush1.msra.mxu0 %v64
    %191 = vmatprep.subr.mxu0 0.0
    %192 = vmatpush1.msra.mxu0 %v65
    %193 = vmatprep.subr.mxu0 0.0
    %194 = vmatpush1.msra.mxu0 %v66
    %195 = vmatprep.subr.mxu0 0.0
    %196 = vmatpush1.msra.mxu0 %v67
    %197 = vmatprep.subr.mxu0 0.0
    %198 = vmatpush1.msra.mxu0 %v68
    %199 = vmatprep.subr.mxu0 0.0
    %200 = vmatpush1.msra.mxu0 %v69
    %201 = vmatprep.subr.mxu0 0.0
    %202 = vmatpush1.msra.mxu0 %v70
    %203 = vmatprep.subr.mxu0 0.0
    %204 = vmatpush1.msra.mxu0 %v71
    %205 = vmatprep.subr.mxu0 0.0
    %206 = vmatpush1.msra.mxu0 %v72
    %207 = vmatprep.subr.mxu0 0.0
    %208 = vmatpush1.msra.mxu0 %v73
    %209 = vmatprep.mubr.f32.mxu0 %v36
    %210 = vmatmul.mubr.f32.gmra.mrb[0].mxu0 %v35
    %v211 = vpop.f32.mrb[0].mxu0
    %v212 = vadd.f32 %v140, %v211
    %v213 = vpop.f32.mrb[0].mxu0
    %214 = vdwg.mxu0
    %215 = vmatprep.subr.mxu0 0.0
    %216 = vmatpush1.msra.mxu0 %v74
    %217 = vmatprep.subr.mxu0 0.0
    %218 = vmatpush1.msra.mxu0 %v75
    %219 = vmatprep.subr.mxu0 0.0
    %220 = vmatpush1.msra.mxu0 %v76
    %221 = vmatprep.subr.mxu0 0.0
    %222 = vmatpush1.msra.mxu0 %v77
    %223 = vmatprep.subr.mxu0 0.0
    %224 = vmatpush1.msra.mxu0 %v78
    %225 = vmatprep.subr.mxu0 0.0
    %226 = vmatpush1.msra.mxu0 %v79
    %227 = vmatprep.subr.mxu0 0.0
    %228 = vmatpush1.msra.mxu0 %v80
    %229 = vmatprep.subr.mxu0 0.0
    %230 = vmatpush1.msra.mxu0 %v81
    %231 = vmatprep.subr.mxu0 0.0
    %232 = vmatpush1.msra.mxu0 %v82
    %233 = vmatprep.subr.mxu0 0.0
    %234 = vmatpush1.msra.mxu0 %v83
    %235 = vmatprep.subr.mxu0 0.0
    %236 = vmatpush1.msra.mxu0 %v84
    %237 = vmatprep.subr.mxu0 0.0
    %238 = vmatpush1.msra.mxu0 %v85
    %239 = vmatprep.subr.mxu0 0.0
    %240 = vmatpush1.msra.mxu0 %v86
    %241 = vmatprep.subr.mxu0 0.0
    %242 = vmatpush1.msra.mxu0 %v87
    %243 = vmatprep.subr.mxu0 0.0
    %244 = vmatpush1.msra.mxu0 %v88
    %245 = vmatprep.subr.mxu0 0.0
    %246 = vmatpush1.msra.mxu0 %v89
    %247 = vmatprep.subr.mxu0 0.0
    %248 = vmatpush1.msra.mxu0 %v90
    %249 = vmatprep.subr.mxu0 0.0
    %250 = vmatpush1.msra.mxu0 %v91
    %251 = vmatprep.subr.mxu0 0.0
    %252 = vmatpush1.msra.mxu0 %v92
    %253 = vmatprep.subr.mxu0 0.0
    %254 = vmatpush1.msra.mxu0 %v93
    %255 = vmatprep.subr.mxu0 0.0
    %256 = vmatpush1.msra.mxu0 %v94
    %257 = vmatprep.subr.mxu0 0.0
    %258 = vmatpush1.msra.mxu0 %v95
    %259 = vmatprep.subr.mxu0 0.0
    %260 = vmatpush1.msra.mxu0 %v96
    %261 = vmatprep.subr.mxu0 0.0
    %262 = vmatpush1.msra.mxu0 %v97
    %263 = vmatprep.subr.mxu0 0.0
    %264 = vmatpush1.msra.mxu0 %v98
    %265 = vmatprep.subr.mxu0 0.0
    %266 = vmatpush1.msra.mxu0 %v99
    %267 = vmatprep.subr.mxu0 0.0
    %268 = vmatpush1.msra.mxu0 %v100
    %269 = vmatprep.subr.mxu0 0.0
    %270 = vmatpush1.msra.mxu0 %v101
    %271 = vmatprep.subr.mxu0 0.0
    %272 = vmatpush1.msra.mxu0 %v102
    %273 = vmatprep.subr.mxu0 0.0
    %274 = vmatpush1.msra.mxu0 %v103
    %275 = vmatprep.subr.mxu0 0.0
    %276 = vmatpush1.msra.mxu0 %v104
    %277 = vmatprep.subr.mxu0 0.0
    %278 = vmatpush1.msra.mxu0 %v105
    %279 = vmatprep.mubr.f32.mxu0 %v38
    %280 = vmatmul.mubr.f32.gmra.mrb[0].mxu0 %v37
    %v281 = vpop.f32.mrb[0].mxu0
    %v282 = vadd.f32 %v212, %v281
    %v283 = vpop.f32.mrb[0].mxu0
    %284 = vdwg.mxu0
    %285 = vmatprep.subr.mxu0 0.0
    %286 = vmatpush1.msra.mxu0 %v106
    %287 = vmatprep.subr.mxu0 0.0
    %288 = vmatpush1.msra.mxu0 %v107
    %289 = vmatprep.subr.mxu0 0.0
    %290 = vmatpush1.msra.mxu0 %v108
    %291 = vmatprep.subr.mxu0 0.0
    %292 = vmatpush1.msra.mxu0 %v109
    %293 = vmatprep.subr.mxu0 0.0
    %294 = vmatpush1.msra.mxu0 %v110
    %295 = vmatprep.subr.mxu0 0.0
    %296 = vmatpush1.msra.mxu0 %v111
    %297 = vmatprep.subr.mxu0 0.0
    %298 = vmatpush1.msra.mxu0 %v112
    %299 = vmatprep.subr.mxu0 0.0
    %300 = vmatpush1.msra.mxu0 %v113
    %301 = vmatprep.subr.mxu0 0.0
    %302 = vmatpush1.msra.mxu0 %v114
    %303 = vmatprep.subr.mxu0 0.0
    %304 = vmatpush1.msra.mxu0 %v115
    %305 = vmatprep.subr.mxu0 0.0
    %306 = vmatpush1.msra.mxu0 %v116
    %307 = vmatprep.subr.mxu0 0.0
    %308 = vmatpush1.msra.mxu0 %v117
    %309 = vmatprep.subr.mxu0 0.0
    %310 = vmatpush1.msra.mxu0 %v118
    %311 = vmatprep.subr.mxu0 0.0
    %312 = vmatpush1.msra.mxu0 %v119
    %313 = vmatprep.subr.mxu0 0.0
    %314 = vmatpush1.msra.mxu0 %v120
    %315 = vmatprep.subr.mxu0 0.0
    %316 = vmatpush1.msra.mxu0 %v121
    %317 = vmatprep.subr.mxu0 0.0
    %318 = vmatpush1.msra.mxu0 %v122
    %319 = vmatprep.subr.mxu0 0.0
    %320 = vmatpush1.msra.mxu0 %v123
    %321 = vmatprep.subr.mxu0 0.0
    %322 = vmatpush1.msra.mxu0 %v124
    %323 = vmatprep.subr.mxu0 0.0
    %324 = vmatpush1.msra.mxu0 %v125
    %325 = vmatprep.subr.mxu0 0.0
    %326 = vmatpush1.msra.mxu0 %v126
    %327 = vmatprep.subr.mxu0 0.0
    %328 = vmatpush1.msra.mxu0 %v127
    %329 = vmatprep.subr.mxu0 0.0
    %330 = vmatpush1.msra.mxu0 %v128
    %331 = vmatprep.subr.mxu0 0.0
    %332 = vmatpush1.msra.mxu0 %v129
    %333 = vmatprep.subr.mxu0 0.0
    %334 = vmatpush1.msra.mxu0 %v130
    %335 = vmatprep.subr.mxu0 0.0
    %336 = vmatpush1.msra.mxu0 %v131
    %337 = vmatprep.subr.mxu0 0.0
    %338 = vmatpush1.msra.mxu0 %v132
    %339 = vmatprep.subr.mxu0 0.0
    %340 = vmatpush1.msra.mxu0 %v133
    %341 = vmatprep.subr.mxu0 0.0
    %342 = vmatpush1.msra.mxu0 %v134
    %343 = vmatprep.subr.mxu0 0.0
    %344 = vmatpush1.msra.mxu0 %v135
    %345 = vmatprep.subr.mxu0 0.0
    %346 = vmatpush1.msra.mxu0 %v136
    %347 = vmatprep.subr.mxu0 0.0
    %348 = vmatpush1.msra.mxu0 %v137
    %349 = vmatprep.mubr.f32.mxu0 %v40
    %350 = vmatmul.mubr.f32.gmra.mrb[0].mxu0 %v39
    %v351 = vpop.f32.mrb[0].mxu0
    %v352 = vadd.f32 %v282, %v351
    %v353 = vpop.f32.mrb[0].mxu0
    %354 = vdwg.mxu0
    %355 = vmatprep.subr.mxu0 0.0
    %356 = vmatpush1.msra.mxu0 %v138
    %357 = vmatprep.subr.mxu0 0.0
    %358 = vmatpush1.msra.mxu0 %v139
    %359 = vmatprep.subr.mxu0 0.0
    %360 = vmatpush1.msra.mxu0 0.0
    %361 = vmatprep.subr.mxu0 0.0
    %362 = vmatpush1.msra.mxu0 0.0
    %363 = vmatprep.subr.mxu0 0.0
    %364 = vmatpush1.msra.mxu0 0.0
    %365 = vmatprep.subr.mxu0 0.0
    %366 = vmatpush1.msra.mxu0 0.0
    %367 = vmatprep.subr.mxu0 0.0
    %368 = vmatpush1.msra.mxu0 0.0
    %369 = vmatprep.subr.mxu0 0.0
    %370 = vmatpush1.msra.mxu0 0.0
    %371 = vmatprep.subr.mxu0 0.0
    %372 = vmatpush1.msra.mxu0 0.0
    %373 = vmatprep.subr.mxu0 0.0
    %374 = vmatpush1.msra.mxu0 0.0
    %375 = vmatprep.subr.mxu0 0.0
    %376 = vmatpush1.msra.mxu0 0.0
    %377 = vmatprep.subr.mxu0 0.0
    %378 = vmatpush1.msra.mxu0 0.0
    %379 = vmatprep.subr.mxu0 0.0
    %380 = vmatpush1.msra.mxu0 0.0
    %381 = vmatprep.subr.mxu0 0.0
    %382 = vmatpush1.msra.mxu0 0.0
    %383 = vmatprep.subr.mxu0 0.0
    %384 = vmatpush1.msra.mxu0 0.0
    %385 = vmatprep.subr.mxu0 0.0
    %386 = vmatpush1.msra.mxu0 0.0
    %387 = vmatprep.subr.mxu0 0.0
    %388 = vmatpush1.msra.mxu0 0.0
    %389 = vmatprep.subr.mxu0 0.0
    %390 = vmatpush1.msra.mxu0 0.0
    %391 = vmatprep.subr.mxu0 0.0
    %392 = vmatpush1.msra.mxu0 0.0
    %393 = vmatprep.subr.mxu0 0.0
    %394 = vmatpush1.msra.mxu0 0.0
    %395 = vmatprep.subr.mxu0 0.0
    %396 = vmatpush1.msra.mxu0 0.0
    %397 = vmatprep.subr.mxu0 0.0
    %398 = vmatpush1.msra.mxu0 0.0
    %399 = vmatprep.subr.mxu0 0.0
    %400 = vmatpush1.msra.mxu0 0.0
    %401 = vmatprep.subr.mxu0 0.0
    %402 = vmatpush1.msra.mxu0 0.0
    %403 = vmatprep.subr.mxu0 0.0
    %404 = vmatpush1.msra.mxu0 0.0
    %405 = vmatprep.subr.mxu0 0.0
    %406 = vmatpush1.msra.mxu0 0.0
    %407 = vmatprep.subr.mxu0 0.0
    %408 = vmatpush1.msra.mxu0 0.0
    %409 = vmatprep.subr.mxu0 0.0
    %410 = vmatpush1.msra.mxu0 0.0
    %411 = vmatprep.subr.mxu0 0.0
    %412 = vmatpush1.msra.mxu0 0.0
    %413 = vmatprep.subr.mxu0 0.0
    %414 = vmatpush1.msra.mxu0 0.0
    %415 = vmatprep.subr.mxu0 0.0
    %416 = vmatpush1.msra.mxu0 0.0
    %417 = vmatprep.subr.mxu0 0.0
    %418 = vmatpush1.msra.mxu0 0.0
    %419 = vmatprep.mubr.f32.mxu0 0.0
    %420 = vmatmul.mubr.f32.gmra.mrb[0].mxu0 %v143
    %v421 = vpop.f32.mrb[0].mxu0
    %v422 = vadd.f32 %v352, %v421
    %v423 = vpop.f32.mrb[0].mxu0
    %424 = vdwg.mxu0
    %v425 = vmax.f32 %v422, 0.0
    %v426 = vld [vmem:[%s3] sm:$0xff]
    %v427 = vld [vmem:[%s3 + $0x8] sm:$0xff]
    %v428 = vld [vmem:[%s3 + $0x10] sm:$0xff]
    %v429 = vld [vmem:[%s3 + $0x18] sm:$0xff]
    %v430 = vld [vmem:[%s3 + $0x20] sm:$0xff]
    %v431 = vld [vmem:[%s3 + $0x28] sm:$0xff]
    %v432 = vld [vmem:[%s3 + $0x30] sm:$0xff]
    %v433 = vld [vmem:[%s3 + $0x38] sm:$0xff]
    %v434 = vld [vmem:[%s3 + $0x40] sm:$0xff]
    %v435 = vld [vmem:[%s3 + $0x48] sm:$0xff]
    %v436 = vld [vmem:[%s3 + $0x50] sm:$0xff]
    %v437 = vld [vmem:[%s3 + $0x58] sm:$0xff]
    %v438 = vld [vmem:[%s3 + $0x60] sm:$0xff]
    %v439 = vld [vmem:[%s3 + $0x68] sm:$0xff]
    %v440 = vld [vmem:[%s3 + $0x70] sm:$0xff]
    %v441 = vld [vmem:[%s3 + $0x78] sm:$0xff]
    %v442 = vld [vmem:[%s4] sm:$0x1]
    %v444 = vlaneseq
    %v445 = vshrl.u32 %v444, 7
    %v446 = vsub.s32 0, %v445
    %v447 = vrot.slane %v442, %v446
    %449 = vmatprep.subr.mxu0 0.0
    %450 = vmatpush1.msra.mxu0 %v426
    %451 = vmatprep.subr.mxu0 0.0
    %452 = vmatpush1.msra.mxu0 %v427
    %453 = vmatprep.subr.mxu0 0.0
    %454 = vmatpush1.msra.mxu0 %v428
    %455 = vmatprep.subr.mxu0 0.0
    %456 = vmatpush1.msra.mxu0 %v429
    %457 = vmatprep.subr.mxu0 0.0
    %458 = vmatpush1.msra.mxu0 %v430
    %459 = vmatprep.subr.mxu0 0.0
    %460 = vmatpush1.msra.mxu0 %v431
    %461 = vmatprep.subr.mxu0 0.0
    %462 = vmatpush1.msra.mxu0 %v432
    %463 = vmatprep.subr.mxu0 0.0
    %464 = vmatpush1.msra.mxu0 %v433
    %465 = vmatprep.subr.mxu0 0.0
    %466 = vmatpush1.msra.mxu0 %v434
    %467 = vmatprep.subr.mxu0 0.0
    %468 = vmatpush1.msra.mxu0 %v435
    %469 = vmatprep.subr.mxu0 0.0
    %470 = vmatpush1.msra.mxu0 %v436
    %471 = vmatprep.subr.mxu0 0.0
    %472 = vmatpush1.msra.mxu0 %v437
    %473 = vmatprep.subr.mxu0 0.0
    %474 = vmatpush1.msra.mxu0 %v438
    %475 = vmatprep.subr.mxu0 0.0
    %476 = vmatpush1.msra.mxu0 %v439
    %477 = vmatprep.subr.mxu0 0.0
    %478 = vmatpush1.msra.mxu0 %v440
    %479 = vmatprep.subr.mxu0 0.0
    %480 = vmatpush1.msra.mxu0 %v441
    %481 = vmatprep.subr.mxu0 0.0
    %482 = vmatpush1.msra.mxu0 0.0
    %483 = vmatprep.subr.mxu0 0.0
    %484 = vmatpush1.msra.mxu0 0.0
    %485 = vmatprep.subr.mxu0 0.0
    %486 = vmatpush1.msra.mxu0 0.0
    %487 = vmatprep.subr.mxu0 0.0
    %488 = vmatpush1.msra.mxu0 0.0
    %489 = vmatprep.subr.mxu0 0.0
    %490 = vmatpush1.msra.mxu0 0.0
    %491 = vmatprep.subr.mxu0 0.0
    %492 = vmatpush1.msra.mxu0 0.0
    %493 = vmatprep.subr.mxu0 0.0
    %494 = vmatpush1.msra.mxu0 0.0
    %495 = vmatprep.subr.mxu0 0.0
    %496 = vmatpush1.msra.mxu0 0.0
    %497 = vmatprep.subr.mxu0 0.0
    %498 = vmatpush1.msra.mxu0 0.0
    %499 = vmatprep.subr.mxu0 0.0
    %500 = vmatpush1.msra.mxu0 0.0
    %501 = vmatprep.subr.mxu0 0.0
    %502 = vmatpush1.msra.mxu0 0.0
    %503 = vmatprep.subr.mxu0 0.0
    %504 = vmatpush1.msra.mxu0 0.0
    %505 = vmatprep.subr.mxu0 0.0
    %506 = vmatpush1.msra.mxu0 0.0
    %507 = vmatprep.subr.mxu0 0.0
    %508 = vmatpush1.msra.mxu0 0.0
    %509 = vmatprep.subr.mxu0 0.0
    %510 = vmatpush1.msra.mxu0 0.0
    %511 = vmatprep.subr.mxu0 0.0
    %512 = vmatpush1.msra.mxu0 0.0
    %513 = vmatprep.mubr.f32.mxu0 0.0
    %514 = vmatmul.mubr.f32.gmra.mrb[0].mxu0 %v425
    %v515 = vpop.f32.mrb[0].mxu0
    %v516 = vadd.f32 %v447, %v515
    %v517 = vpop.f32.mrb[0].mxu0
    %518 = vdwg.mxu0
    %vm519 = vcmask 64512
    %520 = vst.msk [vmem:[#allocation5] sm:$0xff] %vm519, %v516
    // Predicated region
    $region26: #{tpu_custom_call.1} parent=1 // pred_check
      _
    $region27: #{tpu_custom_call.1} parent=1 // pred_check_branch
      %522 = sbr.rel (0) target = $region29
    $region28: #{tpu_custom_call.1} parent=1 // pred_region
      %s524 = ssub.s32 128, 128
      %525 = vsyncadd [#allocation4], %s524
      %s527 = sshll.u32 [#allocation5], 4
      %s528 = int_to_ptr.vmem [resolvable:$true] %s527
      %530 = dma.vmem_to_hbm [thread:$0]  %s528, 128, %s5, [#allocation4]
    $region29: #{tpu_custom_call.1} parent=1 // pred_fallthru
      _
    // Predicated region
    $region30: #{tpu_custom_call.1} parent=1 // pred_check
      _
    $region31: #{tpu_custom_call.1} parent=1 // pred_check_branch
      %532 = sbr.rel (0) target = $region33
    $region32: #{tpu_custom_call.1} parent=1 // pred_region
      %533 = dma.done [#allocation4], 128
    $region33: #{tpu_custom_call.1} parent=1 // pred_fallthru
      _
    %534 = vsyncpa [#allocation3], 1
    %535 = vsyncpa [#allocation4], 1

</llo_original>
